<compile_context>
chip_gen: v7x
topology: tpu7x:2x2x1
jax: 0.10.0
libtpu: 0.0.40
codegen_flags: <defaults>
</compile_context>

<pallas_src>
import jax
import jax.numpy as jnp
from jax.experimental import pallas as pl
from jax.experimental.pallas import tpu as pltpu


def _round_up(x, m):
    return (x + m - 1) // m * m


_VMEM = pl.BlockSpec(memory_space=pltpu.MemorySpace.VMEM)


# ---------------------------------------------------------------------------
# Kernels
# ---------------------------------------------------------------------------
def enc_proj_kernel(enc_ref, wattn_ref, battn_ref, encw_ref):
    """enc_w = enc @ W_attn + b_attn.  enc is (Bp*S, Hp), row-major."""
    enc_bf = enc_ref[...].astype(jnp.bfloat16)
    out = jnp.dot(enc_bf, wattn_ref[...], preferred_element_type=jnp.float32)
    encw_ref[...] = out + battn_ref[...]


def decoder_step_kernel(z_ref, h_ref, encw_ref, wcat_ref, wout_ref, ball_ref,
                        dec_out_ref, attn_ref, hnew_ref):
    """One fused decode step.

    z_ref   : (Bp, I + 2*Hp) f32   [dec_input | lastc | h_prev] (zero-padded)
    h_ref   : (Bp, Hp)       f32   previous hidden state (zero-padded)
    encw_ref: (Bp, S, Hp)    f32   precomputed attention keys
    wcat_ref: (I + 2*Hp, 6*Hp) bf16  block-diag [W_ih ; W_hh] (pre-transposed)
    wout_ref: (Hp, Op)       bf16
    ball_ref: (1, 6*Hp + Op) f32   [b_ih | b_hh | b_out] bias slab
    """
    Hp = h_ref.shape[-1]
    h = h_ref[...]

    # ---- GRU cell: ONE fused MXU matmul gives [gi | gh] (PyTorch gates r,z,n)
    g = jnp.dot(z_ref[...].astype(jnp.bfloat16), wcat_ref[...],
                preferred_element_type=jnp.float32)
    g = g + ball_ref[:, :6 * Hp]
    gi = g[:, :3 * Hp]
    gh = g[:, 3 * Hp:]
    r = jax.nn.sigmoid(gi[:, :Hp] + gh[:, :Hp])
    zg = jax.nn.sigmoid(gi[:, Hp:2 * Hp] + gh[:, Hp:2 * Hp])
    n = jnp.tanh(gi[:, 2 * Hp:] + r * gh[:, 2 * Hp:])
    h_new = (1.0 - zg) * n + zg * h                                 # (Bp, Hp)

    # ---- Luong attention on precomputed keys: VPU multiply + XLU reductions
    enc_w = encw_ref[...]                                           # (Bp, S, Hp)
    score = jnp.sum(enc_w * h_new[:, None, :], axis=-1)             # (Bp, S)
    score = score - jnp.max(score, axis=-1, keepdims=True)
    e = jnp.exp(score)
    inv = pl.reciprocal(jnp.sum(e, axis=-1, keepdims=True), approx=True)
    alpha = e * inv                                                 # (Bp, S)
    attn_w = jnp.sum(alpha[:, :, None] * enc_w, axis=1)             # (Bp, Hp)

    # ---- output projection
    dec_out = jnp.dot(h_new.astype(jnp.bfloat16), wout_ref[...],
                      preferred_element_type=jnp.float32)
    dec_out = dec_out + ball_ref[:, 6 * Hp:]

    dec_out_ref[...] = dec_out
    attn_ref[...] = attn_w
    hnew_ref[...] = h_new


# ---------------------------------------------------------------------------
# Parameters
# ---------------------------------------------------------------------------
def init_params(key, output_size, hidden_size, input_size):
    """PyTorch-like uniform(-1/sqrt(H), 1/sqrt(H)) init, logical (unpadded) layout."""
    H, I, O = hidden_size, input_size, output_size
    k = 1.0 / jnp.sqrt(jnp.float32(H))
    ks = jax.random.split(key, 8)
    u = lambda kk, shape: jax.random.uniform(kk, shape, jnp.float32, -k, k)
    return {
        'w_ih_t': u(ks[0], (I + H, 3 * H)),   # GRU weight_ih, pre-transposed
        'w_hh_t': u(ks[1], (H, 3 * H)),       # GRU weight_hh, pre-transposed
        'b_ih':   u(ks[2], (1, 3 * H)),
        'b_hh':   u(ks[3], (1, 3 * H)),
        'w_attn_t': u(ks[4], (H, H)),         # attention Linear(H, H)
        'b_attn':   u(ks[5], (1, H)),
        'w_out_t': u(ks[6], (H, O)),          # out Linear(H, O)
        'b_out':   u(ks[7], (1, O)),
        # self.fc (Linear(2H, H)) and dropout are unused in forward().
    }


def prepare_params(params, *, input_size, hidden_size, output_size,
                   mm_dtype=jnp.bfloat16):
    """Pad to lane-dense (128-multiple) widths and fuse the two GRU weights.

    Done ONCE; the padded/fused weights are reused by every decode step.
    Pass mm_dtype=jnp.float32 for bit-exact f32 matmuls if needed.
    """
    I, H, O = input_size, hidden_size, output_size
    Hp = _round_up(H, 128)
    Op = _round_up(O, 128)

    w_ih = params['w_ih_t']          # (I+H, 3H), rows ordered [dec_input | lastc]
    w_hh = params['w_hh_t']          # (H, 3H)

    # Fused block weight: rows [x (I) | lastc (Hp) | h_prev (Hp)],
    # cols [gi_r gi_z gi_n gh_r gh_z gh_n], each gate padded to Hp lanes.
    # Padded rows/cols are zero => padded hidden lanes stay exactly 0.
    w_cat = jnp.zeros((I + 2 * Hp, 6 * Hp), jnp.float32)
    b_all = jnp.zeros((1, 6 * Hp + Op), jnp.float32)
    for gate in range(3):
        src = slice(gate * H, (gate + 1) * H)
        # gi (input->hidden) columns
        w_cat = w_cat.at[0:I, gate * Hp:gate * Hp + H].set(w_ih[0:I, src])
        w_cat = w_cat.at[I:I + H, gate * Hp:gate * Hp + H].set(w_ih[I:I + H, src])
        # gh (hidden->hidden) columns
        w_cat = w_cat.at[I + Hp:I + Hp + H,
                         3 * Hp + gate * Hp:3 * Hp + gate * Hp + H].set(w_hh[:, src])
        b_all = b_all.at[:, gate * Hp:gate * Hp + H].set(params['b_ih'][:, src])
        b_all = b_all.at[:, 3 * Hp + gate * Hp:3 * Hp + gate * Hp + H].set(
            params['b_hh'][:, src])
    b_all = b_all.at[:, 6 * Hp:6 * Hp + O].set(params['b_out'])

    w_attn = jnp.zeros((Hp, Hp), jnp.float32).at[:H, :H].set(params['w_attn_t'])
    b_attn = jnp.zeros((1, Hp), jnp.float32).at[:, :H].set(params['b_attn'])
    w_out = jnp.zeros((Hp, Op), jnp.float32).at[:H, :O].set(params['w_out_t'])

    return {
        'w_cat': w_cat.astype(mm_dtype),
        'w_attn': w_attn.astype(mm_dtype),
        'w_out': w_out.astype(mm_dtype),
        'b_all': b_all,
        'b_attn': b_attn,
        'I': I, 'H': H, 'O': O, 'Hp': Hp, 'Op': Op,
    }


# ---------------------------------------------------------------------------
# Wrappers
# ---------------------------------------------------------------------------
def encode_attention_keys(enc_output, prep):
    """Luong attention keys enc_w.  h-independent: run ONCE per source sequence."""
    B, S, H = enc_output.shape
    Hp = prep['Hp']
    Bp = _round_up(B, 8)
    enc_pad = jnp.zeros((Bp, S, Hp), jnp.float32).at[:B, :, :H].set(
        enc_output.astype(jnp.float32))
    enc2d = enc_pad.reshape(Bp * S, Hp)
    encw2d = pl.pallas_call(
        enc_proj_kernel,
        out_shape=jax.ShapeDtypeStruct((Bp * S, Hp), jnp.float32),
        in_specs=[_VMEM, _VMEM, _VMEM],
        out_specs=_VMEM,
    )(enc2d, prep['w_attn'], prep['b_attn'])
    # TODO(synk): for very long S on v7x (64 MiB VMEM/TC) tile this matmul over
    # S with a BlockSpec grid instead of a whole-array block.
    return encw2d.reshape(Bp, S, Hp)


def decoder_step(dec_input, lasts, lastc, enc_w_pad, prep):
    """One decode step given precomputed (padded) attention keys."""
    B, _ = dec_input.shape
    I, H, O = prep['I'], prep['H'], prep['O']
    Hp, Op = prep['Hp'], prep['Op']
    Bp = enc_w_pad.shape[0]
    h_prev = lasts[0].astype(jnp.float32)                  # (B, H)

    # glue: padded [dec_input | lastc | h_prev] slab + padded hidden state
    z = jnp.zeros((Bp, I + 2 * Hp), jnp.float32)
    z = z.at[:B, :I].set(dec_input.astype(jnp.float32))
    z = z.at[:B, I:I + H].set(lastc.astype(jnp.float32))
    z = z.at[:B, I + Hp:I + Hp + H].set(h_prev)
    h_pad = jnp.zeros((Bp, Hp), jnp.float32).at[:B, :H].set(h_prev)

    out_shapes = (
        jax.ShapeDtypeStruct((Bp, Op), jnp.float32),
        jax.ShapeDtypeStruct((Bp, Hp), jnp.float32),
        jax.ShapeDtypeStruct((Bp, Hp), jnp.float32),
    )
    dec_out_p, attn_p, hnew_p = pl.pallas_call(
        decoder_step_kernel,
        out_shape=out_shapes,
        in_specs=[_VMEM] * 6,
        out_specs=(_VMEM, _VMEM, _VMEM),
    )(z, h_pad, enc_w_pad, prep['w_cat'], prep['w_out'], prep['b_all'])

    dec_out = dec_out_p[:B, :O]
    attn_w = attn_p[:B, :H]
    hidden = hnew_p[:B, :H][None]                          # (1, B, H)
    return dec_out, attn_w, hidden


def decoder_forward(dec_input, lasts, lastc, enc_output, prep):
    """Mirrors Decoder.forward (single decode step).

    dec_input (B, I), lasts (1, B, H), lastc (B, H), enc_output (B, S, H)
    -> (dec_output (B, O), attn_weight (B, H), hidden (1, B, H))
    """
    # h-independent projection: in a T-step decode this is hoisted out of the
    # per-step loop and computed once per sequence.
    enc_w_pad = encode_attention_keys(enc_output, prep)
    # TODO(synk): a multi-step decode driver would put the step loop on a grid
    # axis with constant-index weight BlockSpecs so W_cat/W_out/enc_w stay
    # VMEM-resident; the reference module only defines a single step.
    return decoder_step(dec_input, lasts, lastc, enc_w_pad, prep)


if __name__ == "__main__":
    # small shapes consistent with the module
    B, I, H, S, O = 2, 16, 32, 8, 24

    key = jax.random.PRNGKey(0)
    kp, k1, k2, k3, k4 = jax.random.split(key, 5)

    params = init_params(kp, output_size=O, hidden_size=H, input_size=I)
    prep = prepare_params(params, input_size=I, hidden_size=H, output_size=O)

    dec_input = jax.random.normal(k1, (B, I), jnp.float32)
    lasts = jax.random.normal(k2, (1, B, H), jnp.float32)
    lastc = jax.random.normal(k3, (B, H), jnp.float32)
    enc_output = jax.random.normal(k4, (B, S, H), jnp.float32)

    dec_out, attn_w, hidden = decoder_forward(dec_input, lasts, lastc,
                                              enc_output, prep)
    jax.block_until_ready((dec_out, attn_w, hidden))

    assert dec_out.shape == (B, O)
    assert attn_w.shape == (B, H)
    assert hidden.shape == (1, B, H)
    assert bool(jnp.all(jnp.isfinite(dec_out)))
    assert bool(jnp.all(jnp.isfinite(attn_w)))
    assert bool(jnp.all(jnp.isfinite(hidden)))
    print("KERNEL_OK")
</pallas_src>

<mosaic_0001>
module attributes {stable_mosaic.version = 11 : i64} {
  func.func @enc_proj_kernel(%arg0: memref<64x128xf32, #tpu.memory_space<vmem>>, %arg1: memref<128x128xbf16, #tpu.memory_space<vmem>>, %arg2: memref<1x128xf32, #tpu.memory_space<vmem>>, %arg3: memref<64x128xf32, #tpu.memory_space<vmem>>) attributes {dimension_semantics = [], scalar_prefetch = 0 : i64, scratch_operands = 0 : i64, tpu.core_type = #tpu.core_type<tc>} {
    %c0 = arith.constant 0 : index
    %c0_0 = arith.constant 0 : index
    %0 = vector.load %arg0[%c0, %c0_0] : memref<64x128xf32, #tpu.memory_space<vmem>>, vector<64x128xf32>
    %1 = arith.truncf %0 : vector<64x128xf32> to vector<64x128xbf16>
    %c0_1 = arith.constant 0 : index
    %c0_2 = arith.constant 0 : index
    %2 = vector.load %arg1[%c0_1, %c0_2] : memref<128x128xbf16, #tpu.memory_space<vmem>>, vector<128x128xbf16>
    %cst = arith.constant dense<0.000000e+00> : vector<64x128xf32>
    %3 = tpu.matmul %1, %2, %cst {dimension_numbers = #tpu.dot_dimension_numbers<[1], [0], [0], [1], [0, 0, 1, 1], [], []>} : vector<64x128xbf16>, vector<128x128xbf16>, vector<64x128xf32> -> vector<64x128xf32>
    %c0_3 = arith.constant 0 : index
    %c0_4 = arith.constant 0 : index
    %4 = vector.load %arg2[%c0_3, %c0_4] : memref<1x128xf32, #tpu.memory_space<vmem>>, vector<1x128xf32>
    %5 = vector.broadcast %4 : vector<1x128xf32> to vector<64x128xf32>
    %6 = arith.addf %3, %5 : vector<64x128xf32>
    %c0_5 = arith.constant 0 : index
    %c0_6 = arith.constant 0 : index
    %7 = vector.load %arg3[%c0_5, %c0_6] : memref<64x128xf32, #tpu.memory_space<vmem>>, vector<64x128xf32>
    tpu.vector_store %arg3[%c0_5, %c0_6], %6 {strides = array<i32>} : memref<64x128xf32, #tpu.memory_space<vmem>>, vector<64x128xf32>,
    return
  }
}

</mosaic_0001>

<llo_original>
// kernel: tpu_custom_call.1
$region0: #{tpu_custom_call.1}
  #allocation0 [shape = 'u32[]', space=smem, size = 0x4, offset = 0x4, fixed_abs, tag = 'smem constant byte address 0x4 - core index']
  #allocation1 [shape = 'u32[144,128]{1,0:T(1,128)}', space=vmem, size = 0x12000, scoped, tag = 'internal scratch']
  %s0 = inlined_call_operand.hbm [shape: f32[64,128], index: 0, kind: input, shape index: {}]
  %s1 = inlined_call_operand.hbm [shape: bf16[128,128], index: 1, kind: input, shape index: {}]
  %s2 = inlined_call_operand.vmem [shape: f32[1,128], index: 2, kind: input, shape index: {}]
  %s3 = inlined_call_operand.hbm [shape: f32[64,128], index: 3, kind: output, shape index: {}]
  %s4 = sld [smem:[#allocation0]]
  $region30: #{tpu_custom_call.1} parent=0
    _
  %s6 = ssub.s32 1, %s4
  %s7 = scalar_select 0, %s6, %s4
  $region1: #{tpu_custom_call.1} parent=0
    #allocation2 [shape = 'u8[32768]{0}', space=vmem, size = 0x8000, scoped, tag = 'input window, operand 0, single buffered']
    #allocation3 [shape = 's32[1]{0}', space=sflag, size = 0x4, scoped, tag = 'scoped memory for tpu_custom_call.1']
    #allocation4 [shape = 's32[1]{0}', space=sflag, size = 0x4, scoped, tag = 'scoped memory for tpu_custom_call.1']
    #allocation5 [shape = 'u8[32768]{0}', space=vmem, size = 0x8000, scoped, tag = 'input window, operand 1, single buffered']
    #allocation6 [shape = 's32[1]{0}', space=sflag, size = 0x4, scoped, tag = 'scoped memory for tpu_custom_call.1']
    #allocation7 [shape = 'u8[32768]{0}', space=vmem, size = 0x8000, scoped, tag = 'output window, operand 0, single buffered']
    %8 = vsyncpa [#allocation3], 0
    %9 = vsyncpa [#allocation6], 0
    %10 = vsyncpa [#allocation4], 0
    // Predicated region
    $region2: #{tpu_custom_call.1} parent=1 // pred_check
      _
    $region3: #{tpu_custom_call.1} parent=1 // pred_check_branch
      %12 = sbr.rel (0) target = $region5
    $region4: #{tpu_custom_call.1} parent=1 // pred_region
      %s14 = ssub.s32 1024, 1024
      %15 = vsyncadd [#allocation3], %s14
      %s16 = sshll.u32 [#allocation2], 4
      %s17 = int_to_ptr.vmem [resolvable:$true] %s16
      %22 = dma.hbm_to_vmem [thread:$0]  %s0, 1024, %s17, [#allocation3], 128, 128, 8
    $region5: #{tpu_custom_call.1} parent=1 // pred_fallthru
      _
    // Predicated region
    $region6: #{tpu_custom_call.1} parent=1 // pred_check
      _
    $region7: #{tpu_custom_call.1} parent=1 // pred_check_branch
      %24 = sbr.rel (0) target = $region9
    $region8: #{tpu_custom_call.1} parent=1 // pred_region
      %s26 = ssub.s32 1024, 1024
      %27 = vsyncadd [#allocation6], %s26
      %s28 = sshll.u32 [#allocation5], 4
      %s29 = int_to_ptr.vmem [resolvable:$true] %s28
      %34 = dma.hbm_to_vmem [thread:$0]  %s1, 1024, %s29, [#allocation6], 64, 64, 4
    $region9: #{tpu_custom_call.1} parent=1 // pred_fallthru
      _
    // Predicated region
    $region10: #{tpu_custom_call.1} parent=1 // pred_check
      _
    $region11: #{tpu_custom_call.1} parent=1 // pred_check_branch
      %36 = sbr.rel (0) target = $region13
    $region12: #{tpu_custom_call.1} parent=1 // pred_region
      _
    $region13: #{tpu_custom_call.1} parent=1 // pred_fallthru
      _
    // Predicated region
    $region14: #{tpu_custom_call.1} parent=1 // pred_check
      _
    $region15: #{tpu_custom_call.1} parent=1 // pred_check_branch
      %38 = sbr.rel (0) target = $region17
    $region16: #{tpu_custom_call.1} parent=1 // pred_region
      %39 = dma.done [#allocation3], 1024
    $region17: #{tpu_custom_call.1} parent=1 // pred_fallthru
      _
    // Predicated region
    $region18: #{tpu_custom_call.1} parent=1 // pred_check
      _
    $region19: #{tpu_custom_call.1} parent=1 // pred_check_branch
      %41 = sbr.rel (0) target = $region21
    $region20: #{tpu_custom_call.1} parent=1 // pred_region
      %42 = dma.done [#allocation6], 1024
    $region21: #{tpu_custom_call.1} parent=1 // pred_fallthru
      _
    %v44 = vld [vmem:[#allocation2] sm:$0xff]
    %v45 = vld [vmem:[#allocation2 + $0x8] sm:$0xff]
    %v46 = vld [vmem:[#allocation2 + $0x10] sm:$0xff]
    %v47 = vld [vmem:[#allocation2 + $0x18] sm:$0xff]
    %v48 = vld [vmem:[#allocation2 + $0x20] sm:$0xff]
    %v49 = vld [vmem:[#allocation2 + $0x28] sm:$0xff]
    %v50 = vld [vmem:[#allocation2 + $0x30] sm:$0xff]
    %v51 = vld [vmem:[#allocation2 + $0x38] sm:$0xff]
    %v52 = vpack.c.bf16 %v45, %v44
    %v53 = vpack.c.bf16 %v47, %v46
    %v54 = vpack.c.bf16 %v49, %v48
    %v55 = vpack.c.bf16 %v51, %v50
    %v56 = vld [vmem:[#allocation5] sm:$0xf]
    %v57 = vld [vmem:[#allocation5 + $0x4] sm:$0xf]
    %v58 = vld [vmem:[#allocation5 + $0x8] sm:$0xf]
    %v59 = vld [vmem:[#allocation5 + $0xc] sm:$0xf]
    %v60 = vld [vmem:[#allocation5 + $0x10] sm:$0xf]
    %v61 = vld [vmem:[#allocation5 + $0x14] sm:$0xf]
    %v62 = vld [vmem:[#allocation5 + $0x18] sm:$0xf]
    %v63 = vld [vmem:[#allocation5 + $0x1c] sm:$0xf]
    %v64 = vld [vmem:[#allocation5 + $0x20] sm:$0xf]
    %v65 = vld [vmem:[#allocation5 + $0x24] sm:$0xf]
    %v66 = vld [vmem:[#allocation5 + $0x28] sm:$0xf]
    %v67 = vld [vmem:[#allocation5 + $0x2c] sm:$0xf]
    %v68 = vld [vmem:[#allocation5 + $0x30] sm:$0xf]
    %v69 = vld [vmem:[#allocation5 + $0x34] sm:$0xf]
    %v70 = vld [vmem:[#allocation5 + $0x38] sm:$0xf]
    %v71 = vld [vmem:[#allocation5 + $0x3c] sm:$0xf]
    %v72 = vld [vmem:[%s2] sm:$0x1]
    %v74 = vlaneseq
    %v75 = vshrl.u32 %v74, 7
    %v76 = vsub.s32 0, %v75
    %v77 = vrot.slane %v72, %v76
    %v95 = vunpack.c.l.b16 %v56
    %v96 = vunpack.c.l.b16 %v57
    %v97 = vunpack.c.l.b16 %v58
    %v98 = vunpack.c.l.b16 %v59
    %v99 = vunpack.c.l.b16 %v60
    %v100 = vunpack.c.l.b16 %v61
    %v101 = vunpack.c.l.b16 %v62
    %v102 = vunpack.c.l.b16 %v63
    %v103 = vunpack.c.l.b16 %v64
    %v104 = vunpack.c.l.b16 %v65
    %v105 = vunpack.c.l.b16 %v66
    %v106 = vunpack.c.l.b16 %v67
    %v107 = vunpack.c.l.b16 %v68
    %v108 = vunpack.c.l.b16 %v69
    %v109 = vunpack.c.l.b16 %v70
    %v110 = vunpack.c.l.b16 %v71
    %v111 = vpack.c.b16 %v96, %v95
    %v112 = vpack.c.b16 %v98, %v97
    %v113 = vpack.c.b16 %v100, %v99
    %v114 = vpack.c.b16 %v102, %v101
    %v115 = vpack.c.b16 %v104, %v103
    %v116 = vpack.c.b16 %v106, %v105
    %v117 = vpack.c.b16 %v108, %v107
    %v118 = vpack.c.b16 %v110, %v109
    %127 = vmatprep.subr.bf16.mxu0 0
    %128 = vmatpush1.bf16.msra.mxu0 %v111
    %129 = vmatprep.subr.bf16.mxu0 0
    %130 = vmatpush1.bf16.msra.mxu0 %v112
    %131 = vmatprep.subr.bf16.mxu0 0
    %132 = vmatpush1.bf16.msra.mxu0 %v113
    %133 = vmatprep.subr.bf16.mxu0 0
    %134 = vmatpush1.bf16.msra.mxu0 %v114
    %135 = vmatprep.subr.bf16.mxu0 0
    %136 = vmatpush1.bf16.msra.mxu0 %v115
    %137 = vmatprep.subr.bf16.mxu0 0
    %138 = vmatpush1.bf16.msra.mxu0 %v116
    %139 = vmatprep.subr.bf16.mxu0 0
    %140 = vmatpush1.bf16.msra.mxu0 %v117
    %141 = vmatprep.subr.bf16.mxu0 0
    %142 = vmatpush1.bf16.msra.mxu0 %v118
    %143 = vmatprep.subr.bf16.mxu0 0
    %144 = vmatpush1.bf16.msra.mxu0 0
    %145 = vmatprep.subr.bf16.mxu0 0
    %146 = vmatpush1.bf16.msra.mxu0 0
    %147 = vmatprep.subr.bf16.mxu0 0
    %148 = vmatpush1.bf16.msra.mxu0 0
    %149 = vmatprep.subr.bf16.mxu0 0
    %150 = vmatpush1.bf16.msra.mxu0 0
    %151 = vmatprep.subr.bf16.mxu0 0
    %152 = vmatpush1.bf16.msra.mxu0 0
    %153 = vmatprep.subr.bf16.mxu0 0
    %154 = vmatpush1.bf16.msra.mxu0 0
    %155 = vmatprep.subr.bf16.mxu0 0
    %156 = vmatpush1.bf16.msra.mxu0 0
    %157 = vmatprep.subr.bf16.mxu0 0
    %158 = vmatpush1.bf16.msra.mxu0 0
    %159 = vmatprep.mubr.bf16.mxu0 0
    %160 = vmatmul.mubr.bf16.gmra.mrb[0].mxu0 %v52
    %v161 = vpop.f32.mrb[0].mxu0
    %v162 = vadd.f32 %v77, %v161
    %v163 = vpop.f32.mrb[0].mxu0
    %v164 = vpop.f32.mrb[0].mxu0
    %v165 = vadd.f32 %v77, %v164
    %v166 = vpop.f32.mrb[0].mxu0
    %167 = vmatprep.mubr.bf16.mxu0 0
    %168 = vmatmul.mubr.bf16.gmra.mrb[0].mxu0 %v53
    %v169 = vpop.f32.mrb[0].mxu0
    %v170 = vadd.f32 %v77, %v169
    %v171 = vpop.f32.mrb[0].mxu0
    %v172 = vpop.f32.mrb[0].mxu0
    %v173 = vadd.f32 %v77, %v172
    %v174 = vpop.f32.mrb[0].mxu0
    %175 = vmatprep.mubr.bf16.mxu0 0
    %176 = vmatmul.mubr.bf16.gmra.mrb[0].mxu0 %v54
    %v177 = vpop.f32.mrb[0].mxu0
    %v178 = vadd.f32 %v77, %v177
    %v179 = vpop.f32.mrb[0].mxu0
    %v180 = vpop.f32.mrb[0].mxu0
    %v181 = vadd.f32 %v77, %v180
    %v182 = vpop.f32.mrb[0].mxu0
    %183 = vmatprep.mubr.bf16.mxu0 0
    %184 = vmatmul.mubr.bf16.gmra.mrb[0].mxu0 %v55
    %v185 = vpop.f32.mrb[0].mxu0
    %v186 = vadd.f32 %v77, %v185
    %v187 = vpop.f32.mrb[0].mxu0
    %v188 = vpop.f32.mrb[0].mxu0
    %v189 = vadd.f32 %v77, %v188
    %v190 = vpop.f32.mrb[0].mxu0
    %191 = vdwg.mxu0
    %192 = vst [vmem:[#allocation7] sm:$0xff] %v162
    %193 = vst [vmem:[#allocation7 + $0x8] sm:$0xff] %v165
    %194 = vst [vmem:[#allocation7 + $0x10] sm:$0xff] %v170
    %195 = vst [vmem:[#allocation7 + $0x18] sm:$0xff] %v173
    %196 = vst [vmem:[#allocation7 + $0x20] sm:$0xff] %v178
    %197 = vst [vmem:[#allocation7 + $0x28] sm:$0xff] %v181
    %198 = vst [vmem:[#allocation7 + $0x30] sm:$0xff] %v186
    %199 = vst [vmem:[#allocation7 + $0x38] sm:$0xff] %v189
    // Predicated region
    $region22: #{tpu_custom_call.1} parent=1 // pred_check
      _
    $region23: #{tpu_custom_call.1} parent=1 // pred_check_branch
      %201 = sbr.rel (0) target = $region25
    $region24: #{tpu_custom_call.1} parent=1 // pred_region
      %s203 = ssub.s32 1024, 1024
      %204 = vsyncadd [#allocation4], %s203
      %s205 = sshll.u32 [#allocation7], 4
      %s206 = int_to_ptr.vmem [resolvable:$true] %s205
      %211 = dma.vmem_to_hbm [thread:$0]  %s206, 1024, %s3, [#allocation4], 128, 128, 8
    $region25: #{tpu_custom_call.1} parent=1 // pred_fallthru
      _
    // Predicated region
    $region26: #{tpu_custom_call.1} parent=1 // pred_check
      _
    $region27: #{tpu_custom_call.1} parent=1 // pred_check_branch
      %213 = sbr.rel (0) target = $region29
    $region28: #{tpu_custom_call.1} parent=1 // pred_region
      %214 = dma.done [#allocation4], 1024
    $region29: #{tpu_custom_call.1} parent=1 // pred_fallthru
      _
    %215 = vsyncpa [#allocation3], 1
    %216 = vsyncpa [#allocation6], 1
    %217 = vsyncpa [#allocation4], 1

</llo_original>
